<compile_context>
chip_gen: v5e
topology: v5e:2x2
jax: 0.10.0
libtpu: 0.0.40
codegen_flags: <defaults>
</compile_context>

<pallas_src>
import functools
import math

import jax
import jax.numpy as jnp
from jax import lax
from jax.experimental import pallas as pl
from jax.experimental.pallas import tpu as pltpu


# ----------------------------- kernel helpers -----------------------------

def _layer_norm(x, gamma, beta, eps):
    # x: (N, D); gamma, beta: (1, D)
    mean = jnp.mean(x, axis=-1, keepdims=True)
    var = jnp.mean((x - mean) ** 2, axis=-1, keepdims=True)
    return (x - mean) * lax.rsqrt(var + eps) * gamma + beta


def _gelu_new(x):
    # HF "gelu_new" / tanh-approx GELU
    c = math.sqrt(2.0 / math.pi)
    return 0.5 * x * (1.0 + jnp.tanh(c * (x + 0.044715 * x * x * x)))


# ------------------------------- the kernel -------------------------------

def encoder_layer_kernel(
    x_ref,       # (N, D)      N = B*T, all batch rows stacked
    mask_ref,    # (H*N, N)    additive: user mask + cross-batch -1e9, tiled over heads
    hsel_ref,    # (H*N, D)    0/1 lane mask: row block h selects head h's lanes
    wqkv_ref,    # (D, 3D)     q-scaling folded into the Q block
    wo_ref,      # (D, D)      layer_head_mask folded into the rows
    w1_ref,      # (D, F)
    w2_ref,      # (F, D)
    vec_ref,     # (8, 128)    packed biases / LayerNorm params
    out_ref,     # (N, D)
    *, n_rows, num_heads, d_model, ffn_dim, ln_eps,
):
    N, H, D, F = n_rows, num_heads, d_model, ffn_dim

    x = x_ref[...]                                       # (N, D) f32

    # ---- unpack the small packed vectors (static slices, no extra DMAs) ----
    b_qkv = vec_ref[0:1, 0:3 * D]                        # (1, 3D)
    bo    = vec_ref[1:2, 0:D]
    ln1_g = vec_ref[2:3, 0:D]
    ln1_b = vec_ref[3:4, 0:D]
    b1    = vec_ref[4:5, 0:F]
    b2    = vec_ref[5:6, 0:D]
    ln2_g = vec_ref[6:7, 0:D]
    ln2_b = vec_ref[7:8, 0:D]

    # ---- fused QKV projection (one MXU push instead of three) ----
    qkv = jnp.dot(x, wqkv_ref[...], preferred_element_type=jnp.float32) + b_qkv
    q = qkv[:, 0:D]          # already scaled by head_dim**-0.5 (folded into wqkv/b_qkv)
    k = qkv[:, D:2 * D]
    v = qkv[:, 2 * D:3 * D]

    hsel = hsel_ref[...]                                 # (H*N, D)

    # ---- sublane-stack head-masked queries: one scores matmul for ALL heads/batches ----
    q_stack = jnp.concatenate([q] * H, axis=0) * hsel    # (H*N, D)
    s = lax.dot_general(q_stack, k, (((1,), (1,)), ((), ())),
                        preferred_element_type=jnp.float32)     # (H*N, N)
    s = s + mask_ref[...]    # user attention mask + block-diagonal batch mask

    # ---- single softmax over every (head, query-row) ----
    s = s - jnp.max(s, axis=-1, keepdims=True)
    e = jnp.exp(s)
    p = e * pl.reciprocal(jnp.sum(e, axis=-1, keepdims=True), approx=True)

    # ---- context for all heads, recombined with lane mask + sublane-block adds ----
    ctx = jnp.dot(p, v, preferred_element_type=jnp.float32) * hsel  # (H*N, D)
    attn = ctx[0:N]
    for h in range(1, H):                                # H-1 full-width VPU adds
        attn = attn + ctx[h * N:(h + 1) * N]             # (N, D) concat-free recombine

    # ---- output projection (layer_head_mask already folded into wo rows) ----
    attn = jnp.dot(attn, wo_ref[...], preferred_element_type=jnp.float32) + bo

    # ---- residual + LayerNorm 1 (dropout identity in eval mode) ----
    h1 = _layer_norm(x + attn, ln1_g, ln1_b, ln_eps)

    # ---- FFN ----
    ff = _gelu_new(jnp.dot(h1, w1_ref[...], preferred_element_type=jnp.float32) + b1)
    ff = jnp.dot(ff, w2_ref[...], preferred_element_type=jnp.float32) + b2

    # ---- residual + LayerNorm 2 ----
    h2 = _layer_norm(h1 + ff, ln2_g, ln2_b, ln_eps)

    out_ref[...] = h2.astype(out_ref.dtype)


# ------------------------------- the wrapper -------------------------------

def transformer_encoder_layer(x, attention_mask, layer_head_mask, params,
                              *, num_heads, ln_eps=1e-5):
    B, T, D = x.shape
    F = params["w1"].shape[1]
    H = num_heads
    Hd = D // H
    N = B * T
    scaling = Hd ** (-0.5)
    f32 = jnp.float32

    # ---- fold call-invariant constants into the weights (one-time, outside kernel) ----
    wqkv = jnp.concatenate(
        [params["wq"].astype(f32) * scaling, params["wk"].astype(f32),
         params["wv"].astype(f32)], axis=1)                          # (D, 3D)
    bqkv = jnp.concatenate(
        [params["bq"].astype(f32) * scaling, params["bk"].astype(f32),
         params["bv"].astype(f32)], axis=1)                          # (1, 3D)
    lhm = layer_head_mask.astype(f32)
    wo = params["wo"].astype(f32) * jnp.repeat(lhm, Hd)[:, None]     # head mask folded in

    # ---- pack the 8 tiny vectors into a single (8, 128) tile ----
    vec = jnp.zeros((8, 128), f32)
    vec = vec.at[0, 0:3 * D].set(bqkv[0])
    vec = vec.at[1, 0:D].set(params["bo"].astype(f32)[0])
    vec = vec.at[2, 0:D].set(params["ln1_g"].astype(f32)[0])
    vec = vec.at[3, 0:D].set(params["ln1_b"].astype(f32)[0])
    vec = vec.at[4, 0:F].set(params["b1"].astype(f32)[0])
    vec = vec.at[5, 0:D].set(params["b2"].astype(f32)[0])
    vec = vec.at[6, 0:D].set(params["ln2_g"].astype(f32)[0])
    vec = vec.at[7, 0:D].set(params["ln2_b"].astype(f32)[0])

    # ---- additive mask: user mask + block-diagonal over batch, tiled over heads ----
    base = attention_mask.astype(f32)[:, 0]                          # (B, T, T)
    same_b = (jnp.arange(B)[:, None, None, None] ==
              jnp.arange(B)[None, None, :, None])                    # (B,1,B,1)
    m4 = jnp.where(same_b, base[:, :, None, :], f32(-1e9))           # (B,T,B,T)
    mask_full = jnp.tile(m4.reshape(N, N), (H, 1))                   # (H*N, N)

    # ---- 0/1 lane mask: row block h selects head h's Hd lanes ----
    head_sel = (jnp.arange(D)[None, :] // Hd ==
                jnp.arange(H)[:, None]).astype(f32)                  # (H, D)
    hsel = jnp.repeat(head_sel, N, axis=0)                           # (H*N, D)

    x2d = x.astype(f32).reshape(N, D)

    kernel = functools.partial(
        encoder_layer_kernel,
        n_rows=N, num_heads=H, d_model=D, ffn_dim=F, ln_eps=ln_eps)

    vmem = pl.BlockSpec(memory_space=pltpu.MemorySpace.VMEM)

    flops = 2 * (N * D * 3 * D + H * N * D * N + H * N * N * D
                 + N * D * D + N * D * F + N * F * D)
    transcendentals = H * N * N + N * F + H * N + 2 * N
    bytes_accessed = 4 * (N * D + H * N * N + H * N * D + D * 3 * D
                          + D * D + D * F + F * D + 8 * 128 + N * D)

    # Single kernel invocation (no grid): per-grid-step overhead removed.
    # TODO(synk): on v7x, a grid=(B,) "parallel" batch axis would engage the 2nd TensorCore.
    out2d = pl.pallas_call(
        kernel,
        out_shape=jax.ShapeDtypeStruct((N, D), f32),
        in_specs=[vmem] * 8,
        out_specs=vmem,
        cost_estimate=pl.CostEstimate(
            flops=flops, transcendentals=transcendentals,
            bytes_accessed=bytes_accessed),
    )(x2d, mask_full, hsel, wqkv, wo,
      params["w1"].astype(f32), params["w2"].astype(f32), vec)

    return out2d.reshape(B, T, D)


# --------------------------- pure-JAX reference ---------------------------

def reference_forward(x, attention_mask, layer_head_mask, params,
                      *, num_heads, ln_eps=1e-5):
    B, T, D = x.shape
    Hd = D // num_heads
    scaling = Hd ** (-0.5)

    def ln(h, g, b):
        m = jnp.mean(h, -1, keepdims=True)
        v = jnp.mean((h - m) ** 2, -1, keepdims=True)
        return (h - m) / jnp.sqrt(v + ln_eps) * g + b

    q = (x @ params["wq"] + params["bq"]) * scaling
    k = x @ params["wk"] + params["bk"]
    v = x @ params["wv"] + params["bv"]

    def split(t):  # (B,T,D) -> (B,H,T,Hd)
        return t.reshape(B, T, num_heads, Hd).transpose(0, 2, 1, 3)

    qh, kh, vh = split(q), split(k), split(v)
    s = jnp.einsum("bhtd,bhsd->bhts", qh, kh) + attention_mask
    p = jax.nn.softmax(s, axis=-1)
    p = p * layer_head_mask.reshape(1, num_heads, 1, 1)
    o = jnp.einsum("bhts,bhsd->bhtd", p, vh)
    o = o.transpose(0, 2, 1, 3).reshape(B, T, D)
    o = o @ params["wo"] + params["bo"]

    h1 = ln(x + o, params["ln1_g"], params["ln1_b"])
    ff = h1 @ params["w1"] + params["b1"]
    c = math.sqrt(2.0 / math.pi)
    ff = 0.5 * ff * (1.0 + jnp.tanh(c * (ff + 0.044715 * ff ** 3)))
    ff = ff @ params["w2"] + params["b2"]
    return ln(h1 + ff, params["ln2_g"], params["ln2_b"])


# ----------------------------------- main -----------------------------------

if __name__ == "__main__":
    B, T, D, H, FFN = 2, 8, 32, 4, 64

    key = jax.random.PRNGKey(0)
    keys = jax.random.split(key, 18)

    def w(k, shape, scale=0.05):
        return (scale * jax.random.normal(k, shape)).astype(jnp.float32)

    # Linear weights stored pre-transposed as (in_features, out_features); biases as (1, out).
    params = {
        "wq": w(keys[0], (D, D)), "bq": w(keys[1], (1, D)),
        "wk": w(keys[2], (D, D)), "bk": w(keys[3], (1, D)),
        "wv": w(keys[4], (D, D)), "bv": w(keys[5], (1, D)),
        "wo": w(keys[6], (D, D)), "bo": w(keys[7], (1, D)),
        "ln1_g": jnp.ones((1, D), jnp.float32) + w(keys[8], (1, D)),
        "ln1_b": w(keys[9], (1, D)),
        "w1": w(keys[10], (D, FFN)), "b1": w(keys[11], (1, FFN)),
        "w2": w(keys[12], (FFN, D)), "b2": w(keys[13], (1, D)),
        "ln2_g": jnp.ones((1, D), jnp.float32) + w(keys[14], (1, D)),
        "ln2_b": w(keys[15], (1, D)),
    }

    x = jax.random.normal(keys[16], (B, T, D), dtype=jnp.float32)
    # Additive attention mask: mask out the last 2 source positions of batch 1.
    mask = jnp.zeros((B, 1, T, T), dtype=jnp.float32)
    mask = mask.at[1, :, :, -2:].set(-1e9)
    layer_head_mask = jnp.array([1.0, 1.0, 0.5, 0.0], dtype=jnp.float32)

    out = transformer_encoder_layer(x, mask, layer_head_mask, params, num_heads=H)
    out = jax.block_until_ready(out)

    ref = reference_forward(x, mask, layer_head_mask, params, num_heads=H)
    assert out.shape == (B, T, D)
    # Tolerance loosened slightly vs 1e-4 because the softmax denominator uses the
    # EUP approximate reciprocal (pl.reciprocal(approx=True)).
    err = float(jnp.max(jnp.abs(out - ref)))
    assert jnp.allclose(out, ref, atol=5e-4, rtol=5e-4), err

    print("KERNEL_OK")
</pallas_src>

<mosaic_0001>
module attributes {stable_mosaic.version = 11 : i64} {
  func.func @encoder_layer_kernel(%arg0: memref<16x32xf32, #tpu.memory_space<vmem>>, %arg1: memref<64x16xf32, #tpu.memory_space<vmem>>, %arg2: memref<64x32xf32, #tpu.memory_space<vmem>>, %arg3: memref<32x96xf32, #tpu.memory_space<vmem>>, %arg4: memref<32x32xf32, #tpu.memory_space<vmem>>, %arg5: memref<32x64xf32, #tpu.memory_space<vmem>>, %arg6: memref<64x32xf32, #tpu.memory_space<vmem>>, %arg7: memref<8x128xf32, #tpu.memory_space<vmem>>, %arg8: memref<16x32xf32, #tpu.memory_space<vmem>>) attributes {dimension_semantics = [], scalar_prefetch = 0 : i64, scratch_operands = 0 : i64, tpu.core_type = #tpu.core_type<tc>} {
    %c0 = arith.constant 0 : index
    %c0_0 = arith.constant 0 : index
    %0 = vector.load %arg0[%c0, %c0_0] : memref<16x32xf32, #tpu.memory_space<vmem>>, vector<16x32xf32>
    %c0_1 = arith.constant 0 : index
    %c0_2 = arith.constant 0 : index
    %1 = vector.load %arg7[%c0_1, %c0_2] : memref<8x128xf32, #tpu.memory_space<vmem>>, vector<1x96xf32>
    %c1 = arith.constant 1 : index
    %c0_3 = arith.constant 0 : index
    %2 = vector.load %arg7[%c1, %c0_3] : memref<8x128xf32, #tpu.memory_space<vmem>>, vector<1x32xf32>
    %c2 = arith.constant 2 : index
    %c0_4 = arith.constant 0 : index
    %3 = vector.load %arg7[%c2, %c0_4] : memref<8x128xf32, #tpu.memory_space<vmem>>, vector<1x32xf32>
    %c3 = arith.constant 3 : index
    %c0_5 = arith.constant 0 : index
    %4 = vector.load %arg7[%c3, %c0_5] : memref<8x128xf32, #tpu.memory_space<vmem>>, vector<1x32xf32>
    %c4 = arith.constant 4 : index
    %c0_6 = arith.constant 0 : index
    %5 = vector.load %arg7[%c4, %c0_6] : memref<8x128xf32, #tpu.memory_space<vmem>>, vector<1x64xf32>
    %c5 = arith.constant 5 : index
    %c0_7 = arith.constant 0 : index
    %6 = vector.load %arg7[%c5, %c0_7] : memref<8x128xf32, #tpu.memory_space<vmem>>, vector<1x32xf32>
    %c6 = arith.constant 6 : index
    %c0_8 = arith.constant 0 : index
    %7 = vector.load %arg7[%c6, %c0_8] : memref<8x128xf32, #tpu.memory_space<vmem>>, vector<1x32xf32>
    %c7 = arith.constant 7 : index
    %c0_9 = arith.constant 0 : index
    %8 = vector.load %arg7[%c7, %c0_9] : memref<8x128xf32, #tpu.memory_space<vmem>>, vector<1x32xf32>
    %c0_10 = arith.constant 0 : index
    %c0_11 = arith.constant 0 : index
    %9 = vector.load %arg3[%c0_10, %c0_11] : memref<32x96xf32, #tpu.memory_space<vmem>>, vector<32x96xf32>
    %cst = arith.constant dense<0.000000e+00> : vector<16x96xf32>
    %10 = tpu.matmul %0, %9, %cst {dimension_numbers = #tpu.dot_dimension_numbers<[1], [0], [0], [1], [0, 0, 1, 1], [], []>} : vector<16x32xf32>, vector<32x96xf32>, vector<16x96xf32> -> vector<16x96xf32>
    %11 = vector.broadcast %1 : vector<1x96xf32> to vector<16x96xf32>
    %12 = arith.addf %10, %11 : vector<16x96xf32>
    %13 = vector.extract_strided_slice %12 {offsets = [0, 0], sizes = [16, 32], strides = [1, 1]} : vector<16x96xf32> to vector<16x32xf32>
    %14 = vector.extract_strided_slice %12 {offsets = [0, 32], sizes = [16, 32], strides = [1, 1]} : vector<16x96xf32> to vector<16x32xf32>
    %15 = vector.extract_strided_slice %12 {offsets = [0, 64], sizes = [16, 32], strides = [1, 1]} : vector<16x96xf32> to vector<16x32xf32>
    %c0_12 = arith.constant 0 : index
    %c0_13 = arith.constant 0 : index
    %16 = vector.load %arg2[%c0_12, %c0_13] : memref<64x32xf32, #tpu.memory_space<vmem>>, vector<64x32xf32>
    %17 = tpu.concatenate %13, %13, %13, %13 in 0 : vector<16x32xf32>, vector<16x32xf32>, vector<16x32xf32>, vector<16x32xf32> -> vector<64x32xf32>
    %18 = arith.mulf %17, %16 : vector<64x32xf32>
    %cst_14 = arith.constant dense<0.000000e+00> : vector<64x16xf32>
    %19 = tpu.matmul %18, %14, %cst_14 {dimension_numbers = #tpu.dot_dimension_numbers<[1], [1], [0], [0], [0, 0, 1, 0], [], []>} : vector<64x32xf32>, vector<16x32xf32>, vector<64x16xf32> -> vector<64x16xf32>
    %c0_15 = arith.constant 0 : index
    %c0_16 = arith.constant 0 : index
    %20 = vector.load %arg1[%c0_15, %c0_16] : memref<64x16xf32, #tpu.memory_space<vmem>>, vector<64x16xf32>
    %21 = arith.addf %19, %20 : vector<64x16xf32>
    %cst_17 = arith.constant dense<0xFF800000> : vector<64xf32>
    %22 = vector.multi_reduction <maximumf>, %21, %cst_17 [1] : vector<64x16xf32> to vector<64xf32>
    %23 = vector.shape_cast %22 : vector<64xf32> to vector<64x1xf32>
    %24 = vector.broadcast %23 : vector<64x1xf32> to vector<64x16xf32>
    %25 = arith.subf %21, %24 : vector<64x16xf32>
    %26 = math.exp %25 : vector<64x16xf32>
    %cst_18 = arith.constant dense<0.000000e+00> : vector<64xf32>
    %27 = vector.multi_reduction <add>, %26, %cst_18 [1] : vector<64x16xf32> to vector<64xf32>
    %28 = vector.shape_cast %27 : vector<64xf32> to vector<64x1xf32>
    %29 = tpu.reciprocal %28 {approx = true} : vector<64x1xf32> -> vector<64x1xf32>
    %30 = vector.broadcast %29 : vector<64x1xf32> to vector<64x16xf32>
    %31 = arith.mulf %26, %30 : vector<64x16xf32>
    %cst_19 = arith.constant dense<0.000000e+00> : vector<64x32xf32>
    %32 = tpu.matmul %31, %15, %cst_19 {dimension_numbers = #tpu.dot_dimension_numbers<[1], [0], [0], [1], [0, 0, 1, 1], [], []>} : vector<64x16xf32>, vector<16x32xf32>, vector<64x32xf32> -> vector<64x32xf32>
    %33 = arith.mulf %32, %16 : vector<64x32xf32>
    %34 = vector.extract_strided_slice %33 {offsets = [0, 0], sizes = [16, 32], strides = [1, 1]} : vector<64x32xf32> to vector<16x32xf32>
    %35 = vector.extract_strided_slice %33 {offsets = [16, 0], sizes = [16, 32], strides = [1, 1]} : vector<64x32xf32> to vector<16x32xf32>
    %36 = arith.addf %34, %35 : vector<16x32xf32>
    %37 = vector.extract_strided_slice %33 {offsets = [32, 0], sizes = [16, 32], strides = [1, 1]} : vector<64x32xf32> to vector<16x32xf32>
    %38 = arith.addf %36, %37 : vector<16x32xf32>
    %39 = vector.extract_strided_slice %33 {offsets = [48, 0], sizes = [16, 32], strides = [1, 1]} : vector<64x32xf32> to vector<16x32xf32>
    %40 = arith.addf %38, %39 : vector<16x32xf32>
    %c0_20 = arith.constant 0 : index
    %c0_21 = arith.constant 0 : index
    %41 = vector.load %arg4[%c0_20, %c0_21] : memref<32x32xf32, #tpu.memory_space<vmem>>, vector<32x32xf32>
    %cst_22 = arith.constant dense<0.000000e+00> : vector<16x32xf32>
    %42 = tpu.matmul %40, %41, %cst_22 {dimension_numbers = #tpu.dot_dimension_numbers<[1], [0], [0], [1], [0, 0, 1, 1], [], []>} : vector<16x32xf32>, vector<32x32xf32>, vector<16x32xf32> -> vector<16x32xf32>
    %43 = vector.broadcast %2 : vector<1x32xf32> to vector<16x32xf32>
    %44 = arith.addf %42, %43 : vector<16x32xf32>
    %45 = arith.addf %0, %44 : vector<16x32xf32>
    %cst_23 = arith.constant dense<0.000000e+00> : vector<16xf32>
    %46 = vector.multi_reduction <add>, %45, %cst_23 [1] : vector<16x32xf32> to vector<16xf32>
    %47 = vector.shape_cast %46 : vector<16xf32> to vector<16x1xf32>
    %cst_24 = arith.constant 3.200000e+01 : f32
    %48 = vector.broadcast %cst_24 : f32 to vector<16x1xf32>
    %49 = arith.divf %47, %48 : vector<16x1xf32>
    %50 = vector.broadcast %49 : vector<16x1xf32> to vector<16x32xf32>
    %51 = arith.subf %45, %50 : vector<16x32xf32>
    %52 = arith.mulf %51, %51 : vector<16x32xf32>
    %cst_25 = arith.constant dense<0.000000e+00> : vector<16xf32>
    %53 = vector.multi_reduction <add>, %52, %cst_25 [1] : vector<16x32xf32> to vector<16xf32>
    %54 = vector.shape_cast %53 : vector<16xf32> to vector<16x1xf32>
    %cst_26 = arith.constant 3.200000e+01 : f32
    %55 = vector.broadcast %cst_26 : f32 to vector<16x1xf32>
    %56 = arith.divf %54, %55 : vector<16x1xf32>
    %57 = vector.broadcast %49 : vector<16x1xf32> to vector<16x32xf32>
    %58 = arith.subf %45, %57 : vector<16x32xf32>
    %cst_27 = arith.constant 9.99999974E-6 : f32
    %59 = vector.broadcast %cst_27 : f32 to vector<16x1xf32>
    %60 = arith.addf %56, %59 : vector<16x1xf32>
    %61 = math.rsqrt %60 : vector<16x1xf32>
    %62 = vector.broadcast %61 : vector<16x1xf32> to vector<16x32xf32>
    %63 = arith.mulf %58, %62 : vector<16x32xf32>
    %64 = vector.broadcast %3 : vector<1x32xf32> to vector<16x32xf32>
    %65 = arith.mulf %63, %64 : vector<16x32xf32>
    %66 = vector.broadcast %4 : vector<1x32xf32> to vector<16x32xf32>
    %67 = arith.addf %65, %66 : vector<16x32xf32>
    %c0_28 = arith.constant 0 : index
    %c0_29 = arith.constant 0 : index
    %68 = vector.load %arg5[%c0_28, %c0_29] : memref<32x64xf32, #tpu.memory_space<vmem>>, vector<32x64xf32>
    %cst_30 = arith.constant dense<0.000000e+00> : vector<16x64xf32>
    %69 = tpu.matmul %67, %68, %cst_30 {dimension_numbers = #tpu.dot_dimension_numbers<[1], [0], [0], [1], [0, 0, 1, 1], [], []>} : vector<16x32xf32>, vector<32x64xf32>, vector<16x64xf32> -> vector<16x64xf32>
    %70 = vector.broadcast %5 : vector<1x64xf32> to vector<16x64xf32>
    %71 = arith.addf %69, %70 : vector<16x64xf32>
    %cst_31 = arith.constant 5.000000e-01 : f32
    %72 = vector.broadcast %cst_31 : f32 to vector<16x64xf32>
    %73 = arith.mulf %72, %71 : vector<16x64xf32>
    %cst_32 = arith.constant 4.471500e-02 : f32
    %74 = vector.broadcast %cst_32 : f32 to vector<16x64xf32>
    %75 = arith.mulf %74, %71 : vector<16x64xf32>
    %76 = arith.mulf %75, %71 : vector<16x64xf32>
    %77 = arith.mulf %76, %71 : vector<16x64xf32>
    %78 = arith.addf %71, %77 : vector<16x64xf32>
    %cst_33 = arith.constant 0.797884583 : f32
    %79 = vector.broadcast %cst_33 : f32 to vector<16x64xf32>
    %80 = arith.mulf %79, %78 : vector<16x64xf32>
    %81 = math.tanh %80 : vector<16x64xf32>
    %cst_34 = arith.constant 1.000000e+00 : f32
    %82 = vector.broadcast %cst_34 : f32 to vector<16x64xf32>
    %83 = arith.addf %82, %81 : vector<16x64xf32>
    %84 = arith.mulf %73, %83 : vector<16x64xf32>
    %c0_35 = arith.constant 0 : index
    %c0_36 = arith.constant 0 : index
    %85 = vector.load %arg6[%c0_35, %c0_36] : memref<64x32xf32, #tpu.memory_space<vmem>>, vector<64x32xf32>
    %cst_37 = arith.constant dense<0.000000e+00> : vector<16x32xf32>
    %86 = tpu.matmul %84, %85, %cst_37 {dimension_numbers = #tpu.dot_dimension_numbers<[1], [0], [0], [1], [0, 0, 1, 1], [], []>} : vector<16x64xf32>, vector<64x32xf32>, vector<16x32xf32> -> vector<16x32xf32>
    %87 = vector.broadcast %6 : vector<1x32xf32> to vector<16x32xf32>
    %88 = arith.addf %86, %87 : vector<16x32xf32>
    %89 = arith.addf %67, %88 : vector<16x32xf32>
    %cst_38 = arith.constant dense<0.000000e+00> : vector<16xf32>
    %90 = vector.multi_reduction <add>, %89, %cst_38 [1] : vector<16x32xf32> to vector<16xf32>
    %91 = vector.shape_cast %90 : vector<16xf32> to vector<16x1xf32>
    %cst_39 = arith.constant 3.200000e+01 : f32
    %92 = vector.broadcast %cst_39 : f32 to vector<16x1xf32>
    %93 = arith.divf %91, %92 : vector<16x1xf32>
    %94 = vector.broadcast %93 : vector<16x1xf32> to vector<16x32xf32>
    %95 = arith.subf %89, %94 : vector<16x32xf32>
    %96 = arith.mulf %95, %95 : vector<16x32xf32>
    %cst_40 = arith.constant dense<0.000000e+00> : vector<16xf32>
    %97 = vector.multi_reduction <add>, %96, %cst_40 [1] : vector<16x32xf32> to vector<16xf32>
    %98 = vector.shape_cast %97 : vector<16xf32> to vector<16x1xf32>
    %cst_41 = arith.constant 3.200000e+01 : f32
    %99 = vector.broadcast %cst_41 : f32 to vector<16x1xf32>
    %100 = arith.divf %98, %99 : vector<16x1xf32>
    %101 = vector.broadcast %93 : vector<16x1xf32> to vector<16x32xf32>
    %102 = arith.subf %89, %101 : vector<16x32xf32>
    %cst_42 = arith.constant 9.99999974E-6 : f32
    %103 = vector.broadcast %cst_42 : f32 to vector<16x1xf32>
    %104 = arith.addf %100, %103 : vector<16x1xf32>
    %105 = math.rsqrt %104 : vector<16x1xf32>
    %106 = vector.broadcast %105 : vector<16x1xf32> to vector<16x32xf32>
    %107 = arith.mulf %102, %106 : vector<16x32xf32>
    %108 = vector.broadcast %7 : vector<1x32xf32> to vector<16x32xf32>
    %109 = arith.mulf %107, %108 : vector<16x32xf32>
    %110 = vector.broadcast %8 : vector<1x32xf32> to vector<16x32xf32>
    %111 = arith.addf %109, %110 : vector<16x32xf32>
    %c0_43 = arith.constant 0 : index
    %c0_44 = arith.constant 0 : index
    %112 = vector.load %arg8[%c0_43, %c0_44] : memref<16x32xf32, #tpu.memory_space<vmem>>, vector<16x32xf32>
    tpu.vector_store %arg8[%c0_43, %c0_44], %111 {strides = array<i32>} : memref<16x32xf32, #tpu.memory_space<vmem>>, vector<16x32xf32>,
    return
  }
}

</mosaic_0001>

<llo_original>
// kernel: tpu_custom_call.1
$region0: #{tpu_custom_call.1}
  #allocation0 [shape = 'u32[]', space=smem, size = 0x4, offset = 0x4, fixed_abs, tag = 'smem constant byte address 0x4 - core index']
  #allocation1 [shape = 'u32[72,128]{1,0:T(1,128)}', space=vmem, size = 0x9000, scoped, tag = 'internal scratch']
  %s0 = inlined_call_operand.vmem [shape: f32[16,32], index: 0, kind: input, shape index: {}]
  %s1 = inlined_call_operand.vmem [shape: f32[64,16], index: 1, kind: input, shape index: {}]
  %s2 = inlined_call_operand.vmem [shape: f32[64,32], index: 2, kind: input, shape index: {}]
  %s3 = inlined_call_operand.vmem [shape: f32[32,96], index: 3, kind: input, shape index: {}]
  %s4 = inlined_call_operand.vmem [shape: f32[32,32], index: 4, kind: input, shape index: {}]
  %s5 = inlined_call_operand.vmem [shape: f32[32,64], index: 5, kind: input, shape index: {}]
  %s6 = inlined_call_operand.vmem [shape: f32[64,32], index: 6, kind: input, shape index: {}]
  %s7 = inlined_call_operand.vmem [shape: f32[8,128], index: 7, kind: input, shape index: {}]
  %s8 = inlined_call_operand.hbm [shape: f32[16,32], index: 8, kind: output, shape index: {}]
  %s9 = sld [smem:[#allocation0]]
  $region42: #{tpu_custom_call.1} parent=0
    _
  %s11 = ssub.s32 1, %s9
  %s12 = scalar_select 0, %s11, %s9
  $region1: #{tpu_custom_call.1} parent=0
    #allocation2 [shape = 'u8[8192]{0}', space=vmem, size = 0x2000, scoped, tag = 'output window, operand 0, single buffered']
    #allocation3 [shape = 's32[1]{0}', space=sflag, size = 0x4, scoped, tag = 'scoped memory for tpu_custom_call.1']
    %13 = vsyncpa [#allocation3], 0
    // Predicated region
    $region2: #{tpu_custom_call.1} parent=1 // pred_check
      _
    $region3: #{tpu_custom_call.1} parent=1 // pred_check_branch
      %15 = sbr.rel (0) target = $region5
    $region4: #{tpu_custom_call.1} parent=1 // pred_region
      _
    $region5: #{tpu_custom_call.1} parent=1 // pred_fallthru
      _
    // Predicated region
    $region6: #{tpu_custom_call.1} parent=1 // pred_check
      _
    $region7: #{tpu_custom_call.1} parent=1 // pred_check_branch
      %17 = sbr.rel (0) target = $region9
    $region8: #{tpu_custom_call.1} parent=1 // pred_region
      _
    $region9: #{tpu_custom_call.1} parent=1 // pred_fallthru
      _
    // Predicated region
    $region10: #{tpu_custom_call.1} parent=1 // pred_check
      _
    $region11: #{tpu_custom_call.1} parent=1 // pred_check_branch
      %19 = sbr.rel (0) target = $region13
    $region12: #{tpu_custom_call.1} parent=1 // pred_region
      _
    $region13: #{tpu_custom_call.1} parent=1 // pred_fallthru
      _
    // Predicated region
    $region14: #{tpu_custom_call.1} parent=1 // pred_check
      _
    $region15: #{tpu_custom_call.1} parent=1 // pred_check_branch
      %21 = sbr.rel (0) target = $region17
    $region16: #{tpu_custom_call.1} parent=1 // pred_region
      _
    $region17: #{tpu_custom_call.1} parent=1 // pred_fallthru
      _
    // Predicated region
    $region18: #{tpu_custom_call.1} parent=1 // pred_check
      _
    $region19: #{tpu_custom_call.1} parent=1 // pred_check_branch
      %23 = sbr.rel (0) target = $region21
    $region20: #{tpu_custom_call.1} parent=1 // pred_region
      _
    $region21: #{tpu_custom_call.1} parent=1 // pred_fallthru
      _
    // Predicated region
    $region22: #{tpu_custom_call.1} parent=1 // pred_check
      _
    $region23: #{tpu_custom_call.1} parent=1 // pred_check_branch
      %25 = sbr.rel (0) target = $region25
    $region24: #{tpu_custom_call.1} parent=1 // pred_region
      _
    $region25: #{tpu_custom_call.1} parent=1 // pred_fallthru
      _
    // Predicated region
    $region26: #{tpu_custom_call.1} parent=1 // pred_check
      _
    $region27: #{tpu_custom_call.1} parent=1 // pred_check_branch
      %27 = sbr.rel (0) target = $region29
    $region28: #{tpu_custom_call.1} parent=1 // pred_region
      _
    $region29: #{tpu_custom_call.1} parent=1 // pred_fallthru
      _
    // Predicated region
    $region30: #{tpu_custom_call.1} parent=1 // pred_check
      _
    $region31: #{tpu_custom_call.1} parent=1 // pred_check_branch
      %29 = sbr.rel (0) target = $region33
    $region32: #{tpu_custom_call.1} parent=1 // pred_region
      _
    $region33: #{tpu_custom_call.1} parent=1 // pred_fallthru
      _
    %v30 = vld [vmem:[%s0] sm:$0xff]
    %v31 = vld [vmem:[%s0 + $0x8] sm:$0xff]
    %v32 = vld [vmem:[%s7] sm:$0x1]
    %v33 = vld [vmem:[%s7 + $0x1] sm:$0x1]
    %v34 = vld [vmem:[%s7 + $0x2] sm:$0x1]
    %v35 = vld [vmem:[%s7 + $0x3] sm:$0x1]
    %v36 = vld [vmem:[%s7 + $0x4] sm:$0x1]
    %v37 = vld [vmem:[%s7 + $0x5] sm:$0x1]
    %v38 = vld [vmem:[%s7 + $0x6] sm:$0x1]
    %v39 = vld [vmem:[%s7 + $0x7] sm:$0x1]
    %v40 = vld [vmem:[%s3] sm:$0xff]
    %v41 = vld [vmem:[%s3 + $0x8] sm:$0xff]
    %v42 = vld [vmem:[%s3 + $0x10] sm:$0xff]
    %v43 = vld [vmem:[%s3 + $0x18] sm:$0xff]
    %v44 = vperm.slane %v32, 0
    %vm45 = vcmask 261120
    %v47 = vsel %vm45, %v30, 0
    %v50 = vsel %vm45, %v31, 0
    %52 = vmatpush.msra.mxu0 0.0
    %53 = vmatpush.msra.mxu0 0.0
    %54 = vmatpush.msra.mxu0 0.0
    %55 = vmatpush.msra.mxu0 0.0
    %56 = vmatpush.msra.mxu0 0.0
    %57 = vmatpush.msra.mxu0 0.0
    %58 = vmatpush.msra.mxu0 0.0
    %59 = vmatpush.msra.mxu0 0.0
    %60 = vmatpush.msra.mxu0 0.0
    %61 = vmatpush.msra.mxu0 0.0
    %62 = vmatpush.msra.mxu0 0.0
    %63 = vmatpush.msra.mxu0 0.0
    %64 = vmatpush.msra.mxu0 %v43
    %65 = vmatpush.msra.mxu0 %v42
    %66 = vmatpush.msra.mxu0 %v41
    %67 = vmatpush.msra.mxu0 %v40
    %68 = vmatmul.f32.gmra.mxu0 %v47
    %v69 = vpop.f32.mrf.mxu0
    %v70 = vadd.f32 %v44, %v69
    %71 = vmatmul.f32.gmra.mxu0 %v50
    %v72 = vpop.f32.mrf.mxu0
    %v73 = vadd.f32 %v44, %v72
    %74 = vdwg.mxu0
    %v75 = vld [vmem:[%s2] sm:$0xff]
    %v76 = vld [vmem:[%s2 + $0x8] sm:$0xff]
    %v77 = vld [vmem:[%s2 + $0x10] sm:$0xff]
    %v78 = vld [vmem:[%s2 + $0x18] sm:$0xff]
    %v79 = vld [vmem:[%s2 + $0x20] sm:$0xff]
    %v80 = vld [vmem:[%s2 + $0x28] sm:$0xff]
    %v81 = vld [vmem:[%s2 + $0x30] sm:$0xff]
    %v82 = vld [vmem:[%s2 + $0x38] sm:$0xff]
    %v83 = vmul.f32 %v70, %v75
    %v84 = vmul.f32 %v73, %v76
    %v85 = vmul.f32 %v70, %v77
    %v86 = vmul.f32 %v73, %v78
    %v87 = vmul.f32 %v70, %v79
    %v88 = vmul.f32 %v73, %v80
    %v89 = vmul.f32 %v70, %v81
    %v90 = vmul.f32 %v73, %v82
    %v91 = vld [vmem:[%s1] sm:$0xff]
    %v92 = vld [vmem:[%s1 + $0x8] sm:$0xff]
    %v93 = vld [vmem:[%s1 + $0x10] sm:$0xff]
    %v94 = vld [vmem:[%s1 + $0x18] sm:$0xff]
    %v95 = vld [vmem:[%s1 + $0x20] sm:$0xff]
    %v96 = vld [vmem:[%s1 + $0x28] sm:$0xff]
    %v97 = vld [vmem:[%s1 + $0x30] sm:$0xff]
    %v98 = vld [vmem:[%s1 + $0x38] sm:$0xff]
    %101 = vrot.lane.b32.xlu0 %v70, 96
    %v102 = vpop.permute.xlu0 %101
    %103 = vrot.lane.b32.xlu0 %v73, 96
    %v104 = vpop.permute.xlu0 %103
    %v106 = vsel %vm45, %v83, 0
    %v109 = vsel %vm45, %v84, 0
    %v112 = vsel %vm45, %v85, 0
    %v115 = vsel %vm45, %v86, 0
    %v118 = vsel %vm45, %v87, 0
    %v121 = vsel %vm45, %v88, 0
    %v124 = vsel %vm45, %v89, 0
    %v127 = vsel %vm45, %v90, 0
    %v129 = vsel %vm45, %v102, 0
    %v131 = vsel %vm45, %v104, 0
    %133 = vmatpush.xpose.msra.mxu0 0.0
    %134 = vmatpush.xpose.msra.mxu0 0.0
    %135 = vmatpush.xpose.msra.mxu0 0.0
    %136 = vmatpush.xpose.msra.mxu0 0.0
    %137 = vmatpush.xpose.msra.mxu0 0.0
    %138 = vmatpush.xpose.msra.mxu0 0.0
    %139 = vmatpush.xpose.msra.mxu0 0.0
    %140 = vmatpush.xpose.msra.mxu0 0.0
    %141 = vmatpush.xpose.msra.mxu0 0.0
    %142 = vmatpush.xpose.msra.mxu0 0.0
    %143 = vmatpush.xpose.msra.mxu0 0.0
    %144 = vmatpush.xpose.msra.mxu0 0.0
    %145 = vmatpush.xpose.msra.mxu0 0.0
    %146 = vmatpush.xpose.msra.mxu0 0.0
    %147 = vmatpush.xpose.msra.mxu0 %v131
    %148 = vmatpush.xpose.msra.mxu0 %v129
    %149 = vmatmul.f32.gmra.mxu0 %v106
    %v150 = vpop.f32.mrf.mxu0
    %v151 = vadd.f32 %v91, %v150
    %152 = vmatmul.f32.gmra.mxu0 %v109
    %v153 = vpop.f32.mrf.mxu0
    %v154 = vadd.f32 %v92, %v153
    %155 = vmatmul.f32.gmra.mxu0 %v112
    %v156 = vpop.f32.mrf.mxu0
    %v157 = vadd.f32 %v93, %v156
    %158 = vmatmul.f32.gmra.mxu0 %v115
    %v159 = vpop.f32.mrf.mxu0
    %v160 = vadd.f32 %v94, %v159
    %161 = vmatmul.f32.gmra.mxu0 %v118
    %v162 = vpop.f32.mrf.mxu0
    %v163 = vadd.f32 %v95, %v162
    %164 = vmatmul.f32.gmra.mxu0 %v121
    %v165 = vpop.f32.mrf.mxu0
    %v166 = vadd.f32 %v96, %v165
    %167 = vmatmul.f32.gmra.mxu0 %v124
    %v168 = vpop.f32.mrf.mxu0
    %v169 = vadd.f32 %v97, %v168
    %170 = vmatmul.f32.gmra.mxu0 %v127
    %v171 = vpop.f32.mrf.mxu0
    %v172 = vadd.f32 %v98, %v171
    %173 = vdwg.mxu0
    %vm174 = vcmask 130048
    %v175 = vsel %vm174, %v151, -inf
    %176 = vmax.xlane.f32.xlu0 %v175
    %v177 = vpop.xlane.xlu0 %176
    %v178 = vsel %vm174, %v154, -inf
    %179 = vmax.xlane.f32.xlu0 %v178
    %v180 = vpop.xlane.xlu0 %179
    %v181 = vsel %vm174, %v157, -inf
    %182 = vmax.xlane.f32.xlu0 %v181
    %v183 = vpop.xlane.xlu0 %182
    %v184 = vsel %vm174, %v160, -inf
    %185 = vmax.xlane.f32.xlu0 %v184
    %v186 = vpop.xlane.xlu0 %185
    %v187 = vsel %vm174, %v163, -inf
    %188 = vmax.xlane.f32.xlu0 %v187
    %v189 = vpop.xlane.xlu0 %188
    %v190 = vsel %vm174, %v166, -inf
    %191 = vmax.xlane.f32.xlu0 %v190
    %v192 = vpop.xlane.xlu0 %191
    %v193 = vsel %vm174, %v169, -inf
    %194 = vmax.xlane.f32.xlu0 %v193
    %v195 = vpop.xlane.xlu0 %194
    %v196 = vsel %vm174, %v172, -inf
    %197 = vmax.xlane.f32.xlu0 %v196
    %v198 = vpop.xlane.xlu0 %197
    %v199 = vsub.f32 %v151, %v177
    %v200 = vsub.f32 %v154, %v180
    %v201 = vsub.f32 %v157, %v183
    %v202 = vsub.f32 %v160, %v186
    %v203 = vsub.f32 %v163, %v189
    %v204 = vsub.f32 %v166, %v192
    %v205 = vsub.f32 %v169, %v195
    %v206 = vsub.f32 %v172, %v198
    %v207 = vmul.f32 %v199, 1.442695
    %v208 = vpow.pop %v207
    %v209 = vmul.f32 %v200, 1.442695
    %v210 = vpow.pop %v209
    %v211 = vmul.f32 %v201, 1.442695
    %v212 = vpow.pop %v211
    %v213 = vmul.f32 %v202, 1.442695
    %v214 = vpow.pop %v213
    %v215 = vmul.f32 %v203, 1.442695
    %v216 = vpow.pop %v215
    %v217 = vmul.f32 %v204, 1.442695
    %v218 = vpow.pop %v217
    %v219 = vmul.f32 %v205, 1.442695
    %v220 = vpow.pop %v219
    %v221 = vmul.f32 %v206, 1.442695
    %v222 = vpow.pop %v221
    %v223 = vsel %vm174, %v208, 0.0
    %224 = vadd.xlane.f32.xlu0 %v223
    %v225 = vpop.xlane.xlu0 %224
    %v226 = vsel %vm174, %v210, 0.0
    %227 = vadd.xlane.f32.xlu0 %v226
    %v228 = vpop.xlane.xlu0 %227
    %v229 = vsel %vm174, %v212, 0.0
    %230 = vadd.xlane.f32.xlu0 %v229
    %v231 = vpop.xlane.xlu0 %230
    %v232 = vsel %vm174, %v214, 0.0
    %233 = vadd.xlane.f32.xlu0 %v232
    %v234 = vpop.xlane.xlu0 %233
    %v235 = vsel %vm174, %v216, 0.0
    %236 = vadd.xlane.f32.xlu0 %v235
    %v237 = vpop.xlane.xlu0 %236
    %v238 = vsel %vm174, %v218, 0.0
    %239 = vadd.xlane.f32.xlu0 %v238
    %v240 = vpop.xlane.xlu0 %239
    %v241 = vsel %vm174, %v220, 0.0
    %242 = vadd.xlane.f32.xlu0 %v241
    %v243 = vpop.xlane.xlu0 %242
    %v244 = vsel %vm174, %v222, 0.0
    %245 = vadd.xlane.f32.xlu0 %v244
    %v246 = vpop.xlane.xlu0 %245
    %v247 = vrcp.pop %v225
    %v248 = vrcp.pop %v228
    %v249 = vrcp.pop %v231
    %v250 = vrcp.pop %v234
    %v251 = vrcp.pop %v237
    %v252 = vrcp.pop %v240
    %v253 = vrcp.pop %v243
    %v254 = vrcp.pop %v246
    %v255 = vmul.f32 %v208, %v247
    %v256 = vmul.f32 %v210, %v248
    %v257 = vmul.f32 %v212, %v249
    %v258 = vmul.f32 %v214, %v250
    %v259 = vmul.f32 %v216, %v251
    %v260 = vmul.f32 %v218, %v252
    %v261 = vmul.f32 %v220, %v253
    %v262 = vmul.f32 %v222, %v254
    %263 = vrot.lane.b32.xlu0 %v70, 64
    %v264 = vpop.permute.xlu0 %263
    %265 = vrot.lane.b32.xlu0 %v73, 64
    %v266 = vpop.permute.xlu0 %265
    %v270 = vsel %vm174, %v255, 0
    %v273 = vsel %vm174, %v256, 0
    %v276 = vsel %vm174, %v257, 0
    %v279 = vsel %vm174, %v258, 0
    %v282 = vsel %vm174, %v259, 0
    %v285 = vsel %vm174, %v260, 0
    %v288 = vsel %vm174, %v261, 0
    %v291 = vsel %vm174, %v262, 0
    %293 = vmatpush.msra.mxu0 0.0
    %294 = vmatpush.msra.mxu0 0.0
    %295 = vmatpush.msra.mxu0 0.0
    %296 = vmatpush.msra.mxu0 0.0
    %297 = vmatpush.msra.mxu0 0.0
    %298 = vmatpush.msra.mxu0 0.0
    %299 = vmatpush.msra.mxu0 0.0
    %300 = vmatpush.msra.mxu0 0.0
    %301 = vmatpush.msra.mxu0 0.0
    %302 = vmatpush.msra.mxu0 0.0
    %303 = vmatpush.msra.mxu0 0.0
    %304 = vmatpush.msra.mxu0 0.0
    %305 = vmatpush.msra.mxu0 0.0
    %306 = vmatpush.msra.mxu0 0.0
    %307 = vmatpush.msra.mxu0 %v266
    %308 = vmatpush.msra.mxu0 %v264
    %309 = vmatmul.f32.gmra.mxu0 %v270
    %v310 = vpop.f32.mrf.mxu0
    %v311 = vadd.f32 0.0, %v310
    %312 = vmatmul.f32.gmra.mxu0 %v273
    %v313 = vpop.f32.mrf.mxu0
    %v314 = vadd.f32 0.0, %v313
    %315 = vmatmul.f32.gmra.mxu0 %v276
    %v316 = vpop.f32.mrf.mxu0
    %v317 = vadd.f32 0.0, %v316
    %318 = vmatmul.f32.gmra.mxu0 %v279
    %v319 = vpop.f32.mrf.mxu0
    %v320 = vadd.f32 0.0, %v319
    %321 = vmatmul.f32.gmra.mxu0 %v282
    %v322 = vpop.f32.mrf.mxu0
    %v323 = vadd.f32 0.0, %v322
    %324 = vmatmul.f32.gmra.mxu0 %v285
    %v325 = vpop.f32.mrf.mxu0
    %v326 = vadd.f32 0.0, %v325
    %327 = vmatmul.f32.gmra.mxu0 %v288
    %v328 = vpop.f32.mrf.mxu0
    %v329 = vadd.f32 0.0, %v328
    %330 = vmatmul.f32.gmra.mxu0 %v291
    %v331 = vpop.f32.mrf.mxu0
    %v332 = vadd.f32 0.0, %v331
    %333 = vdwg.mxu0
    %v334 = vmul.f32 %v311, %v75
    %v335 = vmul.f32 %v314, %v76
    %v336 = vmul.f32 %v317, %v77
    %v337 = vmul.f32 %v320, %v78
    %v338 = vmul.f32 %v323, %v79
    %v339 = vmul.f32 %v326, %v80
    %v340 = vmul.f32 %v329, %v81
    %v341 = vmul.f32 %v332, %v82
    %v342 = vadd.f32 %v334, %v336
    %v343 = vadd.f32 %v335, %v337
    %v344 = vadd.f32 %v342, %v338
    %v345 = vadd.f32 %v343, %v339
    %v346 = vadd.f32 %v344, %v340
    %v347 = vadd.f32 %v345, %v341
    %v348 = vld [vmem:[%s4] sm:$0xff]
    %v349 = vld [vmem:[%s4 + $0x8] sm:$0xff]
    %v350 = vld [vmem:[%s4 + $0x10] sm:$0xff]
    %v351 = vld [vmem:[%s4 + $0x18] sm:$0xff]
    %v352 = vperm.slane %v33, 0
    %v354 = vsel %vm45, %v346, 0
    %v357 = vsel %vm45, %v347, 0
    %359 = vmatpush.msra.mxu0 0.0
    %360 = vmatpush.msra.mxu0 0.0
    %361 = vmatpush.msra.mxu0 0.0
    %362 = vmatpush.msra.mxu0 0.0
    %363 = vmatpush.msra.mxu0 0.0
    %364 = vmatpush.msra.mxu0 0.0
    %365 = vmatpush.msra.mxu0 0.0
    %366 = vmatpush.msra.mxu0 0.0
    %367 = vmatpush.msra.mxu0 0.0
    %368 = vmatpush.msra.mxu0 0.0
    %369 = vmatpush.msra.mxu0 0.0
    %370 = vmatpush.msra.mxu0 0.0
    %371 = vmatpush.msra.mxu0 %v351
    %372 = vmatpush.msra.mxu0 %v350
    %373 = vmatpush.msra.mxu0 %v349
    %374 = vmatpush.msra.mxu0 %v348
    %375 = vmatmul.f32.gmra.mxu0 %v354
    %v376 = vpop.f32.mrf.mxu0
    %v377 = vadd.f32 %v352, %v376
    %378 = vmatmul.f32.gmra.mxu0 %v357
    %v379 = vpop.f32.mrf.mxu0
    %v380 = vadd.f32 %v352, %v379
    %381 = vdwg.mxu0
    %v382 = vadd.f32 %v30, %v377
    %v383 = vadd.f32 %v31, %v380
    %v384 = vsel %vm45, %v382, 0.0
    %385 = vadd.xlane.f32.xlu0 %v384
    %v386 = vpop.xlane.xlu0 %385
    %v387 = vsel %vm45, %v383, 0.0
    %388 = vadd.xlane.f32.xlu0 %v387
    %v389 = vpop.xlane.xlu0 %388
    %v390 = vrcp.pop 32.0
    %v391 = vmul.f32 32.0, %v390
    %v392 = vsub.f32 1.0, %v391
    %v393 = vmul.f32 %v390, %v392
    %v394 = vadd.f32 %v390, %v393
    %vm395 = vweird.f32 %v390
    %v396 = vsel %vm395, %v390, %v394
    %v397 = vmul.f32 %v386, %v396
    %v398 = vmul.f32 %v389, %v396
    %v399 = vsub.f32 %v382, %v397
    %v400 = vsub.f32 %v383, %v398
    %v401 = vmul.f32 %v399, %v399
    %v402 = vmul.f32 %v400, %v400
    %v403 = vsel %vm45, %v401, 0.0
    %404 = vadd.xlane.f32.xlu0 %v403
    %v405 = vpop.xlane.xlu0 %404
    %v406 = vsel %vm45, %v402, 0.0
    %407 = vadd.xlane.f32.xlu0 %v406
    %v408 = vpop.xlane.xlu0 %407
    %v409 = vmul.f32 %v405, %v396
    %v410 = vmul.f32 %v408, %v396
    %v411 = vadd.f32 %v409, 1e-05
    %v412 = vadd.f32 %v410, 1e-05
    %v413 = vrsqrt.pop %v411
    %v414 = vmul.f32 %v413, %v411
    %v415 = vmul.f32 %v414, %v413
    %v416 = vmul.f32 0.5, %v415
    %v417 = vsub.f32 1.5, %v416
    %v418 = vmul.f32 %v413, %v417
    %vm419 = vweird.f32 %v411
    %vm420 = vweird.f32 %v413
    %vm421 = vmor %vm419, %vm420
    %v422 = vsel %vm421, %v413, %v418
    %v423 = vrsqrt.pop %v412
    %v424 = vmul.f32 %v423, %v412
    %v425 = vmul.f32 %v424, %v423
    %v426 = vmul.f32 0.5, %v425
    %v427 = vsub.f32 1.5, %v426
    %v428 = vmul.f32 %v423, %v427
    %vm429 = vweird.f32 %v412
    %vm430 = vweird.f32 %v423
    %vm431 = vmor %vm429, %vm430
    %v432 = vsel %vm431, %v423, %v428
    %v433 = vmul.f32 %v399, %v422
    %v434 = vmul.f32 %v400, %v432
    %v435 = vperm.slane %v34, 0
    %v436 = vmul.f32 %v433, %v435
    %v437 = vmul.f32 %v434, %v435
    %v438 = vperm.slane %v35, 0
    %v439 = vadd.f32 %v436, %v438
    %v440 = vadd.f32 %v437, %v438
    %v441 = vld [vmem:[%s5] sm:$0xff]
    %v442 = vld [vmem:[%s5 + $0x8] sm:$0xff]
    %v443 = vld [vmem:[%s5 + $0x10] sm:$0xff]
    %v444 = vld [vmem:[%s5 + $0x18] sm:$0xff]
    %v445 = vperm.slane %v36, 0
    %v447 = vsel %vm45, %v439, 0
    %v450 = vsel %vm45, %v440, 0
    %452 = vmatpush.msra.mxu0 0.0
    %453 = vmatpush.msra.mxu0 0.0
    %454 = vmatpush.msra.mxu0 0.0
    %455 = vmatpush.msra.mxu0 0.0
    %456 = vmatpush.msra.mxu0 0.0
    %457 = vmatpush.msra.mxu0 0.0
    %458 = vmatpush.msra.mxu0 0.0
    %459 = vmatpush.msra.mxu0 0.0
    %460 = vmatpush.msra.mxu0 0.0
    %461 = vmatpush.msra.mxu0 0.0
    %462 = vmatpush.msra.mxu0 0.0
    %463 = vmatpush.msra.mxu0 0.0
    %464 = vmatpush.msra.mxu0 %v444
    %465 = vmatpush.msra.mxu0 %v443
    %466 = vmatpush.msra.mxu0 %v442
    %467 = vmatpush.msra.mxu0 %v441
    %468 = vmatmul.f32.gmra.mxu0 %v447
    %v469 = vpop.f32.mrf.mxu0
    %v470 = vadd.f32 %v445, %v469
    %471 = vmatmul.f32.gmra.mxu0 %v450
    %v472 = vpop.f32.mrf.mxu0
    %v473 = vadd.f32 %v445, %v472
    %474 = vdwg.mxu0
    %v475 = vmul.f32 %v470, 0.5
    %v476 = vmul.f32 %v473, 0.5
    %v477 = vmul.f32 %v470, 0.044715
    %v478 = vmul.f32 %v473, 0.044715
    %v479 = vmul.f32 %v477, %v470
    %v480 = vmul.f32 %v478, %v473
    %v481 = vmul.f32 %v479, %v470
    %v482 = vmul.f32 %v480, %v473
    %v483 = vadd.f32 %v470, %v481
    %v484 = vadd.f32 %v473, %v482
    %v485 = vmul.f32 %v483, 0.7978846
    %v486 = vmul.f32 %v484, 0.7978846
    %v487 = vtanh.pop %v485
    %v488 = vtanh.pop %v486
    %v489 = vadd.f32 %v487, 1.0
    %v490 = vadd.f32 %v488, 1.0
    %v491 = vmul.f32 %v475, %v489
    %v492 = vmul.f32 %v476, %v490
    %v493 = vld [vmem:[%s6] sm:$0xff]
    %v494 = vld [vmem:[%s6 + $0x8] sm:$0xff]
    %v495 = vld [vmem:[%s6 + $0x10] sm:$0xff]
    %v496 = vld [vmem:[%s6 + $0x18] sm:$0xff]
    %v497 = vld [vmem:[%s6 + $0x20] sm:$0xff]
    %v498 = vld [vmem:[%s6 + $0x28] sm:$0xff]
    %v499 = vld [vmem:[%s6 + $0x30] sm:$0xff]
    %v500 = vld [vmem:[%s6 + $0x38] sm:$0xff]
    %v501 = vperm.slane %v37, 0
    %vm502 = vcmask 523264
    %v504 = vsel %vm502, %v491, 0
    %v507 = vsel %vm502, %v492, 0
    %509 = vmatpush.msra.mxu0 0.0
    %510 = vmatpush.msra.mxu0 0.0
    %511 = vmatpush.msra.mxu0 0.0
    %512 = vmatpush.msra.mxu0 0.0
    %513 = vmatpush.msra.mxu0 0.0
    %514 = vmatpush.msra.mxu0 0.0
    %515 = vmatpush.msra.mxu0 0.0
    %516 = vmatpush.msra.mxu0 0.0
    %517 = vmatpush.msra.mxu0 %v500
    %518 = vmatpush.msra.mxu0 %v499
    %519 = vmatpush.msra.mxu0 %v498
    %520 = vmatpush.msra.mxu0 %v497
    %521 = vmatpush.msra.mxu0 %v496
    %522 = vmatpush.msra.mxu0 %v495
    %523 = vmatpush.msra.mxu0 %v494
    %524 = vmatpush.msra.mxu0 %v493
    %525 = vmatmul.f32.gmra.mxu0 %v504
    %v526 = vpop.f32.mrf.mxu0
    %v527 = vadd.f32 %v501, %v526
    %528 = vmatmul.f32.gmra.mxu0 %v507
    %v529 = vpop.f32.mrf.mxu0
    %v530 = vadd.f32 %v501, %v529
    %531 = vdwg.mxu0
    %v532 = vadd.f32 %v439, %v527
    %v533 = vadd.f32 %v440, %v530
    %v534 = vsel %vm45, %v532, 0.0
    %535 = vadd.xlane.f32.xlu0 %v534
    %v536 = vpop.xlane.xlu0 %535
    %v537 = vsel %vm45, %v533, 0.0
    %538 = vadd.xlane.f32.xlu0 %v537
    %v539 = vpop.xlane.xlu0 %538
    %v540 = vmul.f32 %v536, %v396
    %v541 = vmul.f32 %v539, %v396
    %v542 = vsub.f32 %v532, %v540
    %v543 = vsub.f32 %v533, %v541
    %v544 = vmul.f32 %v542, %v542
    %v545 = vmul.f32 %v543, %v543
    %v546 = vsel %vm45, %v544, 0.0
    %547 = vadd.xlane.f32.xlu0 %v546
    %v548 = vpop.xlane.xlu0 %547
    %v549 = vsel %vm45, %v545, 0.0
    %550 = vadd.xlane.f32.xlu0 %v549
    %v551 = vpop.xlane.xlu0 %550
    %v552 = vmul.f32 %v548, %v396
    %v553 = vmul.f32 %v551, %v396
    %v554 = vadd.f32 %v552, 1e-05
    %v555 = vadd.f32 %v553, 1e-05
    %v556 = vrsqrt.pop %v554
    %v557 = vmul.f32 %v556, %v554
    %v558 = vmul.f32 %v557, %v556
    %v559 = vmul.f32 0.5, %v558
    %v560 = vsub.f32 1.5, %v559
    %v561 = vmul.f32 %v556, %v560
    %vm562 = vweird.f32 %v554
    %vm563 = vweird.f32 %v556
    %vm564 = vmor %vm562, %vm563
    %v565 = vsel %vm564, %v556, %v561
    %v566 = vrsqrt.pop %v555
    %v567 = vmul.f32 %v566, %v555
    %v568 = vmul.f32 %v567, %v566
    %v569 = vmul.f32 0.5, %v568
    %v570 = vsub.f32 1.5, %v569
    %v571 = vmul.f32 %v566, %v570
    %vm572 = vweird.f32 %v555
    %vm573 = vweird.f32 %v566
    %vm574 = vmor %vm572, %vm573
    %v575 = vsel %vm574, %v566, %v571
    %v576 = vmul.f32 %v542, %v565
    %v577 = vmul.f32 %v543, %v575
    %v578 = vperm.slane %v38, 0
    %v579 = vmul.f32 %v576, %v578
    %v580 = vmul.f32 %v577, %v578
    %v581 = vperm.slane %v39, 0
    %v582 = vadd.f32 %v579, %v581
    %v583 = vadd.f32 %v580, %v581
    %584 = vst.msk [vmem:[#allocation2] sm:$0xff] %vm45, %v582
    %585 = vst.msk [vmem:[#allocation2 + $0x8] sm:$0xff] %vm45, %v583
    // Predicated region
    $region34: #{tpu_custom_call.1} parent=1 // pred_check
      _
    $region35: #{tpu_custom_call.1} parent=1 // pred_check_branch
      %587 = sbr.rel (0) target = $region37
    $region36: #{tpu_custom_call.1} parent=1 // pred_region
      %589 = vsyncadd [#allocation3], 0
      %s590 = sshll.u32 [#allocation2], 4
      %s591 = int_to_ptr.vmem [resolvable:$true] %s590
      %s592 = sshll.u32 %s8, 4
      %s593 = int_to_ptr.hbm [resolvable:$true] %s592
      %598 = dma.vmem_to_hbm [thread:$0]  %s591, 256, %s593, [#allocation3], 128, 128, 8
    $region37: #{tpu_custom_call.1} parent=1 // pred_fallthru
      _
    // Predicated region
    $region38: #{tpu_custom_call.1} parent=1 // pred_check
      _
    $region39: #{tpu_custom_call.1} parent=1 // pred_check_branch
      %600 = sbr.rel (0) target = $region41
    $region40: #{tpu_custom_call.1} parent=1 // pred_region
      %602 = dma.done [#allocation3], 256
    $region41: #{tpu_custom_call.1} parent=1 // pred_fallthru
      _
    %603 = vsyncpa [#allocation3], 1

</llo_original>
